<compile_context>
chip_gen: v7x
topology: tpu7x:2x2x1
jax: 0.10.0
libtpu: 0.0.40
codegen_flags: <defaults>
</compile_context>

<pallas_src>
import functools

import jax
import jax.numpy as jnp
from jax import lax
from jax.experimental import pallas as pl
from jax.experimental.pallas import tpu as pltpu


def _round_up(x: int, m: int) -> int:
    return ((x + m - 1) // m) * m


def _neg_pearson_kernel(x_ref, y_ref, out_ref,
                        sx_ref, sy_ref, sxy_ref, sx2_ref, sy2_ref, *, n):
    """Grid = (batch_tile b, reduction_tile k); k is the innermost axis."""
    k = pl.program_id(1)

    @pl.when(k == 0)
    def _init():
        sx_ref[...] = jnp.zeros_like(sx_ref)
        sy_ref[...] = jnp.zeros_like(sy_ref)
        sxy_ref[...] = jnp.zeros_like(sxy_ref)
        sx2_ref[...] = jnp.zeros_like(sx2_ref)
        sy2_ref[...] = jnp.zeros_like(sy2_ref)

    # Cast the narrow-dtype block to f32 in-register; reductions along lanes.
    x = x_ref[...].astype(jnp.float32)
    y = y_ref[...].astype(jnp.float32)

    sx_ref[...] += jnp.sum(x, axis=1, keepdims=True)
    sy_ref[...] += jnp.sum(y, axis=1, keepdims=True)
    sxy_ref[...] += jnp.sum(x * y, axis=1, keepdims=True)
    sx2_ref[...] += jnp.sum(x * x, axis=1, keepdims=True)
    sy2_ref[...] += jnp.sum(y * y, axis=1, keepdims=True)

    @pl.when(k == pl.num_programs(1) - 1)
    def _finalize():
        nf = jnp.float32(n)                       # true (unpadded) signal length
        sx, sy = sx_ref[...], sy_ref[...]
        num = nf * sxy_ref[...] - sx * sy
        den = (nf * sx2_ref[...] - sx * sx) * (nf * sy2_ref[...] - sy * sy)
        pearson = num * lax.rsqrt(den)            # rsqrt (EUP) + mul, no divide
        out_ref[...] = 1.0 - pearson              # per-row result, (TB, 1)


def neg_pearson_pallas(preds, labels, *, tb_max=128, tk_max=2048):
    """mean over batch of (1 - pearson(preds[i], labels[i]))  ==  Neg_Pearson.forward."""
    assert preds.shape == labels.shape and preds.ndim == 2
    B, T = preds.shape

    # Tile sizes: TB multiple of 8 (f32 sublane), TK multiple of 128 (lanes).
    TB = min(_round_up(B, 8), tb_max)
    B_pad = _round_up(B, TB)
    TK = min(_round_up(T, 128), tk_max)
    T_pad = _round_up(T, TK)

    # Zero padding leaves all five sums unchanged; N below stays the true T.
    if (B_pad, T_pad) != (B, T):
        preds = jnp.pad(preds, ((0, B_pad - B), (0, T_pad - T)))
        labels = jnp.pad(labels, ((0, B_pad - B), (0, T_pad - T)))

    grid = (B_pad // TB, T_pad // TK)
    kernel = functools.partial(_neg_pearson_kernel, n=T)

    per_row = pl.pallas_call(
        kernel,
        out_shape=jax.ShapeDtypeStruct((B_pad, 1), jnp.float32),
        grid_spec=pltpu.PrefetchScalarGridSpec(
            num_scalar_prefetch=0,
            grid=grid,
            in_specs=[
                pl.BlockSpec((TB, TK), lambda b, k: (b, k)),   # preds (native dtype)
                pl.BlockSpec((TB, TK), lambda b, k: (b, k)),   # labels (native dtype)
            ],
            out_specs=pl.BlockSpec((TB, 1), lambda b, k: (b, 0)),
            scratch_shapes=[pltpu.VMEM((TB, 1), jnp.float32)] * 5,
        ),
        compiler_params=pltpu.CompilerParams(
            dimension_semantics=("parallel", "arbitrary")),
    )(preds, labels)

    # Tiny finishing reduction (B scalars) over the true rows only.
    return jnp.mean(per_row[:B, 0])


def _neg_pearson_ref(preds, labels):
    """Pure-JAX reference mirroring the torch module exactly."""
    n = jnp.float32(preds.shape[1])
    sx = preds.sum(axis=1)
    sy = labels.sum(axis=1)
    sxy = (preds * labels).sum(axis=1)
    sx2 = (preds * preds).sum(axis=1)
    sy2 = (labels * labels).sum(axis=1)
    pear = (n * sxy - sx * sy) / jnp.sqrt((n * sx2 - sx * sx) * (n * sy2 - sy * sy))
    return jnp.mean(1.0 - pear)


if __name__ == "__main__":
    key = jax.random.PRNGKey(0)

    # Small shapes consistent with the module: (batch, signal_length).
    # First case is deliberately not tile-aligned to exercise the padding path;
    # last case exercises the narrow-dtype (bf16) DMA path.
    cases = [
        ((3, 300), jnp.float32, 1e-5),
        ((2, 256), jnp.float32, 1e-5),
        ((4, 384), jnp.bfloat16, 1e-2),
    ]
    for (B, T), dtype, tol in cases:
        key, k1, k2 = jax.random.split(key, 3)
        preds_f32 = jax.random.normal(k1, (B, T), dtype=jnp.float32)
        labels_f32 = preds_f32 + 0.3 * jax.random.normal(k2, (B, T), dtype=jnp.float32)
        preds = preds_f32.astype(dtype)
        labels = labels_f32.astype(dtype)

        loss = neg_pearson_pallas(preds, labels)
        jax.block_until_ready(loss)

        expected = _neg_pearson_ref(preds.astype(jnp.float32),
                                    labels.astype(jnp.float32))
        assert jnp.allclose(loss, expected, rtol=tol, atol=tol), (dtype, loss, expected)

    print("KERNEL_OK")
</pallas_src>

<mosaic_0001>
module attributes {stable_mosaic.version = 11 : i64} {
  func.func @_neg_pearson_kernel(%arg0: i32, %arg1: i32, %arg2: memref<8x384xf32, #tpu.memory_space<vmem>>, %arg3: memref<8x384xf32, #tpu.memory_space<vmem>>, %arg4: memref<8x1xf32, #tpu.memory_space<vmem>>, %arg5: memref<8x1xf32, #tpu.memory_space<vmem>>, %arg6: memref<8x1xf32, #tpu.memory_space<vmem>>, %arg7: memref<8x1xf32, #tpu.memory_space<vmem>>, %arg8: memref<8x1xf32, #tpu.memory_space<vmem>>, %arg9: memref<8x1xf32, #tpu.memory_space<vmem>>) attributes {dimension_semantics = [#tpu.dimension_semantics<parallel>, #tpu.dimension_semantics<arbitrary>], iteration_bounds = array<i64: 1, 1>, scalar_prefetch = 0 : i64, scratch_operands = 5 : i64, tpu.core_type = #tpu.core_type<tc>, window_params = [{transform_indices = @transform_0, window_bounds = array<i64: 8, 384>}, {transform_indices = @transform_1, window_bounds = array<i64: 8, 384>}, {transform_indices = @transform_2, window_bounds = array<i64: 8, 1>}]} {
    %c0_i32 = arith.constant 0 : i32
    %0 = arith.cmpi eq, %arg1, %c0_i32 : i32
    %1 = arith.extui %0 : i1 to i32
    %c0_i32_0 = arith.constant 0 : i32
    %2 = arith.cmpi ne, %1, %c0_i32_0 : i32
    scf.if %2 {
      %cst_30 = arith.constant 0.000000e+00 : f32
      %36 = vector.broadcast %cst_30 : f32 to vector<8x1xf32>
      %c0_31 = arith.constant 0 : index
      %c0_32 = arith.constant 0 : index
      %37 = vector.load %arg5[%c0_31, %c0_32] : memref<8x1xf32, #tpu.memory_space<vmem>>, vector<8x1xf32>
      tpu.vector_store %arg5[%c0_31, %c0_32], %36 {strides = array<i32>} : memref<8x1xf32, #tpu.memory_space<vmem>>, vector<8x1xf32>,
      %cst_33 = arith.constant 0.000000e+00 : f32
      %38 = vector.broadcast %cst_33 : f32 to vector<8x1xf32>
      %c0_34 = arith.constant 0 : index
      %c0_35 = arith.constant 0 : index
      %39 = vector.load %arg6[%c0_34, %c0_35] : memref<8x1xf32, #tpu.memory_space<vmem>>, vector<8x1xf32>
      tpu.vector_store %arg6[%c0_34, %c0_35], %38 {strides = array<i32>} : memref<8x1xf32, #tpu.memory_space<vmem>>, vector<8x1xf32>,
      %cst_36 = arith.constant 0.000000e+00 : f32
      %40 = vector.broadcast %cst_36 : f32 to vector<8x1xf32>
      %c0_37 = arith.constant 0 : index
      %c0_38 = arith.constant 0 : index
      %41 = vector.load %arg7[%c0_37, %c0_38] : memref<8x1xf32, #tpu.memory_space<vmem>>, vector<8x1xf32>
      tpu.vector_store %arg7[%c0_37, %c0_38], %40 {strides = array<i32>} : memref<8x1xf32, #tpu.memory_space<vmem>>, vector<8x1xf32>,
      %cst_39 = arith.constant 0.000000e+00 : f32
      %42 = vector.broadcast %cst_39 : f32 to vector<8x1xf32>
      %c0_40 = arith.constant 0 : index
      %c0_41 = arith.constant 0 : index
      %43 = vector.load %arg8[%c0_40, %c0_41] : memref<8x1xf32, #tpu.memory_space<vmem>>, vector<8x1xf32>
      tpu.vector_store %arg8[%c0_40, %c0_41], %42 {strides = array<i32>} : memref<8x1xf32, #tpu.memory_space<vmem>>, vector<8x1xf32>,
      %cst_42 = arith.constant 0.000000e+00 : f32
      %44 = vector.broadcast %cst_42 : f32 to vector<8x1xf32>
      %c0_43 = arith.constant 0 : index
      %c0_44 = arith.constant 0 : index
      %45 = vector.load %arg9[%c0_43, %c0_44] : memref<8x1xf32, #tpu.memory_space<vmem>>, vector<8x1xf32>
      tpu.vector_store %arg9[%c0_43, %c0_44], %44 {strides = array<i32>} : memref<8x1xf32, #tpu.memory_space<vmem>>, vector<8x1xf32>,
    } else {
    }
    %c0 = arith.constant 0 : index
    %c0_1 = arith.constant 0 : index
    %3 = vector.load %arg2[%c0, %c0_1] : memref<8x384xf32, #tpu.memory_space<vmem>>, vector<8x384xf32>
    %c0_2 = arith.constant 0 : index
    %c0_3 = arith.constant 0 : index
    %4 = vector.load %arg3[%c0_2, %c0_3] : memref<8x384xf32, #tpu.memory_space<vmem>>, vector<8x384xf32>
    %c0_4 = arith.constant 0 : index
    %c0_5 = arith.constant 0 : index
    %5 = vector.load %arg5[%c0_4, %c0_5] : memref<8x1xf32, #tpu.memory_space<vmem>>, vector<8x1xf32>
    %cst = arith.constant dense<0.000000e+00> : vector<8xf32>
    %6 = vector.multi_reduction <add>, %3, %cst [1] : vector<8x384xf32> to vector<8xf32>
    %7 = vector.shape_cast %6 : vector<8xf32> to vector<8x1xf32>
    %8 = arith.addf %5, %7 : vector<8x1xf32>
    %c0_6 = arith.constant 0 : index
    %c0_7 = arith.constant 0 : index
    %9 = vector.load %arg5[%c0_6, %c0_7] : memref<8x1xf32, #tpu.memory_space<vmem>>, vector<8x1xf32>
    tpu.vector_store %arg5[%c0_6, %c0_7], %8 {strides = array<i32>} : memref<8x1xf32, #tpu.memory_space<vmem>>, vector<8x1xf32>,
    %c0_8 = arith.constant 0 : index
    %c0_9 = arith.constant 0 : index
    %10 = vector.load %arg6[%c0_8, %c0_9] : memref<8x1xf32, #tpu.memory_space<vmem>>, vector<8x1xf32>
    %cst_10 = arith.constant dense<0.000000e+00> : vector<8xf32>
    %11 = vector.multi_reduction <add>, %4, %cst_10 [1] : vector<8x384xf32> to vector<8xf32>
    %12 = vector.shape_cast %11 : vector<8xf32> to vector<8x1xf32>
    %13 = arith.addf %10, %12 : vector<8x1xf32>
    %c0_11 = arith.constant 0 : index
    %c0_12 = arith.constant 0 : index
    %14 = vector.load %arg6[%c0_11, %c0_12] : memref<8x1xf32, #tpu.memory_space<vmem>>, vector<8x1xf32>
    tpu.vector_store %arg6[%c0_11, %c0_12], %13 {strides = array<i32>} : memref<8x1xf32, #tpu.memory_space<vmem>>, vector<8x1xf32>,
    %c0_13 = arith.constant 0 : index
    %c0_14 = arith.constant 0 : index
    %15 = vector.load %arg7[%c0_13, %c0_14] : memref<8x1xf32, #tpu.memory_space<vmem>>, vector<8x1xf32>
    %16 = arith.mulf %3, %4 : vector<8x384xf32>
    %cst_15 = arith.constant dense<0.000000e+00> : vector<8xf32>
    %17 = vector.multi_reduction <add>, %16, %cst_15 [1] : vector<8x384xf32> to vector<8xf32>
    %18 = vector.shape_cast %17 : vector<8xf32> to vector<8x1xf32>
    %19 = arith.addf %15, %18 : vector<8x1xf32>
    %c0_16 = arith.constant 0 : index
    %c0_17 = arith.constant 0 : index
    %20 = vector.load %arg7[%c0_16, %c0_17] : memref<8x1xf32, #tpu.memory_space<vmem>>, vector<8x1xf32>
    tpu.vector_store %arg7[%c0_16, %c0_17], %19 {strides = array<i32>} : memref<8x1xf32, #tpu.memory_space<vmem>>, vector<8x1xf32>,
    %c0_18 = arith.constant 0 : index
    %c0_19 = arith.constant 0 : index
    %21 = vector.load %arg8[%c0_18, %c0_19] : memref<8x1xf32, #tpu.memory_space<vmem>>, vector<8x1xf32>
    %22 = arith.mulf %3, %3 : vector<8x384xf32>
    %cst_20 = arith.constant dense<0.000000e+00> : vector<8xf32>
    %23 = vector.multi_reduction <add>, %22, %cst_20 [1] : vector<8x384xf32> to vector<8xf32>
    %24 = vector.shape_cast %23 : vector<8xf32> to vector<8x1xf32>
    %25 = arith.addf %21, %24 : vector<8x1xf32>
    %c0_21 = arith.constant 0 : index
    %c0_22 = arith.constant 0 : index
    %26 = vector.load %arg8[%c0_21, %c0_22] : memref<8x1xf32, #tpu.memory_space<vmem>>, vector<8x1xf32>
    tpu.vector_store %arg8[%c0_21, %c0_22], %25 {strides = array<i32>} : memref<8x1xf32, #tpu.memory_space<vmem>>, vector<8x1xf32>,
    %c0_23 = arith.constant 0 : index
    %c0_24 = arith.constant 0 : index
    %27 = vector.load %arg9[%c0_23, %c0_24] : memref<8x1xf32, #tpu.memory_space<vmem>>, vector<8x1xf32>
    %28 = arith.mulf %4, %4 : vector<8x384xf32>
    %cst_25 = arith.constant dense<0.000000e+00> : vector<8xf32>
    %29 = vector.multi_reduction <add>, %28, %cst_25 [1] : vector<8x384xf32> to vector<8xf32>
    %30 = vector.shape_cast %29 : vector<8xf32> to vector<8x1xf32>
    %31 = arith.addf %27, %30 : vector<8x1xf32>
    %c0_26 = arith.constant 0 : index
    %c0_27 = arith.constant 0 : index
    %32 = vector.load %arg9[%c0_26, %c0_27] : memref<8x1xf32, #tpu.memory_space<vmem>>, vector<8x1xf32>
    tpu.vector_store %arg9[%c0_26, %c0_27], %31 {strides = array<i32>} : memref<8x1xf32, #tpu.memory_space<vmem>>, vector<8x1xf32>,
    %c0_i32_28 = arith.constant 0 : i32
    %33 = arith.cmpi eq, %arg1, %c0_i32_28 : i32
    %34 = arith.extui %33 : i1 to i32
    %c0_i32_29 = arith.constant 0 : i32
    %35 = arith.cmpi ne, %34, %c0_i32_29 : i32
    scf.if %35 {
      %c0_30 = arith.constant 0 : index
      %c0_31 = arith.constant 0 : index
      %36 = vector.load %arg5[%c0_30, %c0_31] : memref<8x1xf32, #tpu.memory_space<vmem>>, vector<8x1xf32>
      %c0_32 = arith.constant 0 : index
      %c0_33 = arith.constant 0 : index
      %37 = vector.load %arg6[%c0_32, %c0_33] : memref<8x1xf32, #tpu.memory_space<vmem>>, vector<8x1xf32>
      %c0_34 = arith.constant 0 : index
      %c0_35 = arith.constant 0 : index
      %38 = vector.load %arg7[%c0_34, %c0_35] : memref<8x1xf32, #tpu.memory_space<vmem>>, vector<8x1xf32>
      %cst_36 = arith.constant 3.000000e+02 : f32
      %39 = vector.broadcast %cst_36 : f32 to vector<8x1xf32>
      %40 = arith.mulf %39, %38 : vector<8x1xf32>
      %41 = arith.mulf %36, %37 : vector<8x1xf32>
      %42 = arith.subf %40, %41 : vector<8x1xf32>
      %c0_37 = arith.constant 0 : index
      %c0_38 = arith.constant 0 : index
      %43 = vector.load %arg8[%c0_37, %c0_38] : memref<8x1xf32, #tpu.memory_space<vmem>>, vector<8x1xf32>
      %cst_39 = arith.constant 3.000000e+02 : f32
      %44 = vector.broadcast %cst_39 : f32 to vector<8x1xf32>
      %45 = arith.mulf %44, %43 : vector<8x1xf32>
      %46 = arith.mulf %36, %36 : vector<8x1xf32>
      %47 = arith.subf %45, %46 : vector<8x1xf32>
      %c0_40 = arith.constant 0 : index
      %c0_41 = arith.constant 0 : index
      %48 = vector.load %arg9[%c0_40, %c0_41] : memref<8x1xf32, #tpu.memory_space<vmem>>, vector<8x1xf32>
      %cst_42 = arith.constant 3.000000e+02 : f32
      %49 = vector.broadcast %cst_42 : f32 to vector<8x1xf32>
      %50 = arith.mulf %49, %48 : vector<8x1xf32>
      %51 = arith.mulf %37, %37 : vector<8x1xf32>
      %52 = arith.subf %50, %51 : vector<8x1xf32>
      %53 = arith.mulf %47, %52 : vector<8x1xf32>
      %54 = math.rsqrt %53 : vector<8x1xf32>
      %55 = arith.mulf %42, %54 : vector<8x1xf32>
      %cst_43 = arith.constant 1.000000e+00 : f32
      %56 = vector.broadcast %cst_43 : f32 to vector<8x1xf32>
      %57 = arith.subf %56, %55 : vector<8x1xf32>
      %c0_44 = arith.constant 0 : index
      %c0_45 = arith.constant 0 : index
      %58 = vector.load %arg4[%c0_44, %c0_45] : memref<8x1xf32, #tpu.memory_space<vmem>>, vector<8x1xf32>
      tpu.vector_store %arg4[%c0_44, %c0_45], %57 {strides = array<i32>} : memref<8x1xf32, #tpu.memory_space<vmem>>, vector<8x1xf32>,
    } else {
    }
    return
  }
  func.func @transform_0(%arg0: i32, %arg1: i32) -> (i32, i32) {
    %c0_i32 = arith.constant 0 : i32
    return %arg0, %arg1 : i32, i32
  }
  func.func @transform_1(%arg0: i32, %arg1: i32) -> (i32, i32) {
    %c0_i32 = arith.constant 0 : i32
    return %arg0, %arg1 : i32, i32
  }
  func.func @transform_2(%arg0: i32, %arg1: i32) -> (i32, i32) {
    %c0_i32 = arith.constant 0 : i32
    %c0_i32_0 = arith.constant 0 : i32
    return %arg0, %c0_i32 : i32, i32
  }
}

</mosaic_0001>

<llo_original>
// kernel: tpu_custom_call.1
$region0: #{tpu_custom_call.1}
  #allocation0 [shape = 'u32[]', space=smem, size = 0x4, offset = 0x4, fixed_abs, tag = 'smem constant byte address 0x4 - core index']
  #allocation1 [shape = 'u32[144,128]{1,0:T(1,128)}', space=vmem, size = 0x12000, scoped, tag = 'internal scratch']
  #allocation2 [shape = 'f32[8,1]{1,0:T(8,128)}', space=vmem, size = 0x1000, scoped, tag = 'scratch operand']
  #allocation3 [shape = 'f32[8,1]{1,0:T(8,128)}', space=vmem, size = 0x1000, scoped, tag = 'scratch operand']
  #allocation4 [shape = 'f32[8,1]{1,0:T(8,128)}', space=vmem, size = 0x1000, scoped, tag = 'scratch operand']
  #allocation5 [shape = 'f32[8,1]{1,0:T(8,128)}', space=vmem, size = 0x1000, scoped, tag = 'scratch operand']
  #allocation6 [shape = 'f32[8,1]{1,0:T(8,128)}', space=vmem, size = 0x1000, scoped, tag = 'scratch operand']
  %s0 = inlined_call_operand.hbm [shape: f32[8,384], index: 0, kind: input, shape index: {}]
  %s1 = inlined_call_operand.hbm [shape: f32[8,384], index: 1, kind: input, shape index: {}]
  %s2 = inlined_call_operand.vmem [shape: f32[8,1], index: 2, kind: output, shape index: {}]
  %s3 = sld [smem:[#allocation0]]
  $region34: #{tpu_custom_call.1} parent=0
    _
  %s5 = ssub.s32 1, %s3
  %s6 = scalar_select 0, %s5, %s3
  $region1: #{tpu_custom_call.1} parent=0
    #allocation7 [shape = 'u8[12288]{0}', space=vmem, size = 0x3000, scoped, tag = 'input window, operand 0, single buffered']
    #allocation8 [shape = 's32[1]{0}', space=sflag, size = 0x4, scoped, tag = 'scoped memory for tpu_custom_call.1']
    #allocation9 [shape = 'u8[12288]{0}', space=vmem, size = 0x3000, scoped, tag = 'input window, operand 1, single buffered']
    #allocation10 [shape = 's32[1]{0}', space=sflag, size = 0x4, scoped, tag = 'scoped memory for tpu_custom_call.1']
    %7 = vsyncpa [#allocation8], 0
    %8 = vsyncpa [#allocation10], 0
    // Predicated region
    $region2: #{tpu_custom_call.1} parent=1 // pred_check
      _
    $region3: #{tpu_custom_call.1} parent=1 // pred_check_branch
      %10 = sbr.rel (0) target = $region5
    $region4: #{tpu_custom_call.1} parent=1 // pred_region
      %s12 = ssub.s32 384, 384
      %13 = vsyncadd [#allocation8], %s12
      %s15 = sshll.u32 [#allocation7], 4
      %s16 = int_to_ptr.vmem [resolvable:$true] %s15
      %18 = dma.hbm_to_vmem [thread:$0]  %s0, 384, %s16, [#allocation8]
    $region5: #{tpu_custom_call.1} parent=1 // pred_fallthru
      _
    // Predicated region
    $region6: #{tpu_custom_call.1} parent=1 // pred_check
      _
    $region7: #{tpu_custom_call.1} parent=1 // pred_check_branch
      %20 = sbr.rel (0) target = $region9
    $region8: #{tpu_custom_call.1} parent=1 // pred_region
      %s22 = ssub.s32 384, 384
      %23 = vsyncadd [#allocation10], %s22
      %s25 = sshll.u32 [#allocation9], 4
      %s26 = int_to_ptr.vmem [resolvable:$true] %s25
      %28 = dma.hbm_to_vmem [thread:$0]  %s1, 384, %s26, [#allocation10]
    $region9: #{tpu_custom_call.1} parent=1 // pred_fallthru
      _
    // Predicated region
    $region10: #{tpu_custom_call.1} parent=1 // pred_check
      _
    $region11: #{tpu_custom_call.1} parent=1 // pred_check_branch
      %30 = sbr.rel (0) target = $region13
    $region12: #{tpu_custom_call.1} parent=1 // pred_region
      %31 = dma.done [#allocation8], 384
    $region13: #{tpu_custom_call.1} parent=1 // pred_fallthru
      _
    // Predicated region
    $region14: #{tpu_custom_call.1} parent=1 // pred_check
      _
    $region15: #{tpu_custom_call.1} parent=1 // pred_check_branch
      %33 = sbr.rel (0) target = $region17
    $region16: #{tpu_custom_call.1} parent=1 // pred_region
      %34 = dma.done [#allocation10], 384
    $region17: #{tpu_custom_call.1} parent=1 // pred_fallthru
      _
    %p35 = scmp.eq.s32.totalorder 0, 0
    // Predicated region
    $region18: #{tpu_custom_call.1} parent=1 // pred_check
      %p36 = pneg %p35
    $region19: #{tpu_custom_call.1} parent=1 // pred_check_branch
      %38 = sbr.rel (%p36) target = $region21
    $region20: #{tpu_custom_call.1} parent=1 // pred_region
      %vm39 = vcmask 7168
      %40 = vst.msk [vmem:[#allocation2] sm:$0xff] %vm39, 0.0
      %41 = vst.msk [vmem:[#allocation3] sm:$0xff] %vm39, 0.0
      %42 = vst.msk [vmem:[#allocation4] sm:$0xff] %vm39, 0.0
      %43 = vst.msk [vmem:[#allocation5] sm:$0xff] %vm39, 0.0
      %44 = vst.msk [vmem:[#allocation6] sm:$0xff] %vm39, 0.0
    $region21: #{tpu_custom_call.1} parent=1 // pred_fallthru
      _
    %v45 = vld [vmem:[#allocation7] sm:$0xff]
    %v46 = vld [vmem:[#allocation7 + $0x8] sm:$0xff]
    %v47 = vld [vmem:[#allocation7 + $0x10] sm:$0xff]
    %v48 = vld [vmem:[#allocation9] sm:$0xff]
    %v49 = vld [vmem:[#allocation9 + $0x8] sm:$0xff]
    %v50 = vld [vmem:[#allocation9 + $0x10] sm:$0xff]
    %v51 = vld [vmem:[#allocation2] sm:$0xff]
    %v52 = vadd.f32 %v45, %v46
    %v53 = vadd.f32 %v52, %v47
    %54 = vadd.xlane.f32.xlu0 %v53
    %v55 = vpop.xlane.xlu0 %54
    %v56 = vadd.f32 %v51, %v55
    %vm57 = vcmask 7168
    %58 = vst.msk [vmem:[#allocation2] sm:$0xff] %vm57, %v56
    %v59 = vld [vmem:[#allocation3] sm:$0xff]
    %v60 = vadd.f32 %v48, %v49
    %v61 = vadd.f32 %v60, %v50
    %62 = vadd.xlane.f32.xlu0 %v61
    %v63 = vpop.xlane.xlu0 %62
    %v64 = vadd.f32 %v59, %v63
    %65 = vst.msk [vmem:[#allocation3] sm:$0xff] %vm57, %v64
    %v66 = vld [vmem:[#allocation4] sm:$0xff]
    %v67 = vmul.f32 %v45, %v48
    %v68 = vmul.f32 %v46, %v49
    %v69 = vmul.f32 %v47, %v50
    %v70 = vadd.f32 %v67, %v68
    %v71 = vadd.f32 %v70, %v69
    %72 = vadd.xlane.f32.xlu0 %v71
    %v73 = vpop.xlane.xlu0 %72
    %v74 = vadd.f32 %v66, %v73
    %75 = vst.msk [vmem:[#allocation4] sm:$0xff] %vm57, %v74
    %v76 = vld [vmem:[#allocation5] sm:$0xff]
    %v77 = vmul.f32 %v45, %v45
    %v78 = vmul.f32 %v46, %v46
    %v79 = vmul.f32 %v47, %v47
    %v80 = vadd.f32 %v77, %v78
    %v81 = vadd.f32 %v80, %v79
    %82 = vadd.xlane.f32.xlu0 %v81
    %v83 = vpop.xlane.xlu0 %82
    %v84 = vadd.f32 %v76, %v83
    %85 = vst.msk [vmem:[#allocation5] sm:$0xff] %vm57, %v84
    %v86 = vld [vmem:[#allocation6] sm:$0xff]
    %v87 = vmul.f32 %v48, %v48
    %v88 = vmul.f32 %v49, %v49
    %v89 = vmul.f32 %v50, %v50
    %v90 = vadd.f32 %v87, %v88
    %v91 = vadd.f32 %v90, %v89
    %92 = vadd.xlane.f32.xlu0 %v91
    %v93 = vpop.xlane.xlu0 %92
    %v94 = vadd.f32 %v86, %v93
    %95 = vst.msk [vmem:[#allocation6] sm:$0xff] %vm57, %v94
    // Predicated region
    $region22: #{tpu_custom_call.1} parent=1 // pred_check
      %p96 = pneg %p35
    $region23: #{tpu_custom_call.1} parent=1 // pred_check_branch
      %98 = sbr.rel (%p96) target = $region25
    $region24: #{tpu_custom_call.1} parent=1 // pred_region
      %v99 = vld [vmem:[#allocation2] sm:$0xff]
      %v100 = vld [vmem:[#allocation3] sm:$0xff]
      %v101 = vld [vmem:[#allocation4] sm:$0xff]
      %v102 = vmul.f32 %v101, 300.0
      %v103 = vmul.f32 %v99, %v100
      %v104 = vsub.f32 %v102, %v103
      %v105 = vld [vmem:[#allocation5] sm:$0xff]
      %v106 = vmul.f32 %v105, 300.0
      %v107 = vmul.f32 %v99, %v99
      %v108 = vsub.f32 %v106, %v107
      %v109 = vld [vmem:[#allocation6] sm:$0xff]
      %v110 = vmul.f32 %v109, 300.0
      %v111 = vmul.f32 %v100, %v100
      %v112 = vsub.f32 %v110, %v111
      %v113 = vmul.f32 %v108, %v112
      %v114 = vrsqrt.pop %v113
      %v115 = vmul.f32 %v104, %v114
      %v116 = vsub.f32 1.0, %v115
      %117 = vst.msk [vmem:[%s2] sm:$0xff] %vm57, %v116
    $region25: #{tpu_custom_call.1} parent=1 // pred_fallthru
      _
    // Predicated region
    $region26: #{tpu_custom_call.1} parent=1 // pred_check
      _
    $region27: #{tpu_custom_call.1} parent=1 // pred_check_branch
      %119 = sbr.rel (0) target = $region29
    $region28: #{tpu_custom_call.1} parent=1 // pred_region
      _
    $region29: #{tpu_custom_call.1} parent=1 // pred_fallthru
      _
    // Predicated region
    $region30: #{tpu_custom_call.1} parent=1 // pred_check
      _
    $region31: #{tpu_custom_call.1} parent=1 // pred_check_branch
      %121 = sbr.rel (0) target = $region33
    $region32: #{tpu_custom_call.1} parent=1 // pred_region
      _
    $region33: #{tpu_custom_call.1} parent=1 // pred_fallthru
      _
    %122 = vsyncpa [#allocation8], 1
    %123 = vsyncpa [#allocation10], 1

</llo_original>
